<compile_context>
chip_gen: v7x
topology: tpu7x:2x2x1
jax: 0.10.0
libtpu: 0.0.40
codegen_flags: <defaults>
</compile_context>

<pallas_src>
import jax
import jax.numpy as jnp
from jax.experimental import pallas as pl
from jax.experimental.pallas import tpu as pltpu

_LANE = 128      # TPU lane width (fast / last axis)
_TB_MAX = 128    # max rows per block: 128 x 128 x 4 B = 64 KiB per buffer


def _base_actor_forward_kernel(obs_ref, out_ref):
    """BaseActor.forward: abstract -> identity pass over obs.

    TODO(synk): concrete subclasses replace this copy with their policy-MLP:
    an M/N/K-tiled MXU matmul (K last in the grid, 'arbitrary' on K, f32 VMEM
    accumulator with pl.when init/finalize, bf16 MXU inputs / f32 epilogue).
    """
    out_ref[...] = obs_ref[...]


@jax.jit
def base_actor_forward(obs: jax.Array) -> jax.Array:
    """BaseActor.forward(obs) -> obs, as a tiled lane-dense Pallas copy."""
    orig_shape = obs.shape
    dtype = obs.dtype
    n = obs.size

    itemsize = jnp.dtype(dtype).itemsize
    sub = max(8, 32 // itemsize)            # sublane granule: 8 f32 / 16 bf16 / 32 i8

    rows = -(-n // _LANE)                   # ceil(n / 128)  -> lane-dense rows
    rows = -(-rows // sub) * sub            # round rows up to the sublane granule
    tb = min(_TB_MAX, rows)                 # block rows (always a multiple of `sub`)
    rows = -(-rows // tb) * tb              # rows divisible by the block size

    flat = obs.reshape(-1)
    pad = rows * _LANE - n
    if pad:
        flat = jnp.pad(flat, (0, pad))
    x2d = flat.reshape(rows, _LANE)

    out2d = pl.pallas_call(
        _base_actor_forward_kernel,
        out_shape=jax.ShapeDtypeStruct((rows, _LANE), dtype),
        grid=(rows // tb,),
        in_specs=[pl.BlockSpec((tb, _LANE), lambda i: (i, 0))],
        out_specs=pl.BlockSpec((tb, _LANE), lambda i: (i, 0)),
        # Identity forward: alias the output onto the input buffer (P8) so
        # the pass does not allocate/fill a second HBM copy of obs.
        input_output_aliases={0: 0},
        compiler_params=pltpu.CompilerParams(
            # Row/batch axis is independent -> shard across the two
            # TensorCores on v7x; neutral on single-TC v5e/v6e.
            dimension_semantics=("parallel",),
        ),
    )(x2d)

    return out2d.reshape(-1)[:n].reshape(orig_shape)


# TODO(synk): BaseActor.sample is abstract (subclass draws from the predicted
# distribution) — no BaseActor-level compute to translate.
# TODO(synk): BaseActor.evaluate is abstract (subclass computes
# log_prob(action | obs)) — no BaseActor-level compute to translate.


if __name__ == "__main__":
    key = jax.random.PRNGKey(0)

    # Small actor-style observation: batch=2, feature=32.  Ragged vs the
    # (8, 128) granule -> exercises the pad + lane-dense repack path.
    obs_small = jax.random.normal(key, (2, 32), dtype=jnp.float32)
    out_small = jax.block_until_ready(base_actor_forward(obs_small))
    assert out_small.shape == obs_small.shape
    assert out_small.dtype == obs_small.dtype
    assert bool(jnp.array_equal(out_small, obs_small))

    # Slightly larger obs to exercise the multi-step parallel grid
    # (64*512 elems -> 256 rows -> grid=(2,)) while staying small (128 KiB).
    obs_big = jax.random.normal(jax.random.PRNGKey(0), (64, 512), dtype=jnp.float32)
    out_big = jax.block_until_ready(base_actor_forward(obs_big))
    assert out_big.shape == obs_big.shape
    assert bool(jnp.array_equal(out_big, obs_big))

    print("KERNEL_OK")
</pallas_src>

<mosaic_0001>
module attributes {stable_mosaic.version = 11 : i64} {
  func.func @_base_actor_forward_kernel(%arg0: i32, %arg1: memref<8x128xf32, #tpu.memory_space<vmem>>, %arg2: memref<8x128xf32, #tpu.memory_space<vmem>>) attributes {dimension_semantics = [#tpu.dimension_semantics<parallel>], iteration_bounds = array<i64: 1>, scalar_prefetch = 0 : i64, scratch_operands = 0 : i64, tpu.core_type = #tpu.core_type<tc>, window_params = [{transform_indices = @transform_0, window_bounds = array<i64: 8, 128>}, {transform_indices = @transform_1, window_bounds = array<i64: 8, 128>}]} {
    %c0 = arith.constant 0 : index
    %c0_0 = arith.constant 0 : index
    %0 = vector.load %arg1[%c0, %c0_0] : memref<8x128xf32, #tpu.memory_space<vmem>>, vector<8x128xf32>
    %c0_1 = arith.constant 0 : index
    %c0_2 = arith.constant 0 : index
    %1 = vector.load %arg2[%c0_1, %c0_2] : memref<8x128xf32, #tpu.memory_space<vmem>>, vector<8x128xf32>
    tpu.vector_store %arg2[%c0_1, %c0_2], %0 {strides = array<i32>} : memref<8x128xf32, #tpu.memory_space<vmem>>, vector<8x128xf32>,
    return
  }
  func.func @transform_0(%arg0: i32) -> (i32, i32) {
    %c0_i32 = arith.constant 0 : i32
    %c0_i32_0 = arith.constant 0 : i32
    return %arg0, %c0_i32 : i32, i32
  }
  func.func @transform_1(%arg0: i32) -> (i32, i32) {
    %c0_i32 = arith.constant 0 : i32
    %c0_i32_0 = arith.constant 0 : i32
    return %arg0, %c0_i32 : i32, i32
  }
}

</mosaic_0001>

<llo_original>
// kernel: base_actor_forward.1
$region0: #{base_actor_forward.1}
  #allocation0 [shape = 'u32[]', space=smem, size = 0x4, offset = 0x4, fixed_abs, tag = 'smem constant byte address 0x4 - core index']
  #allocation1 [shape = 'u32[144,128]{1,0:T(1,128)}', space=vmem, size = 0x12000, scoped, tag = 'internal scratch']
  %s0 = inlined_call_operand.vmem [shape: f32[8,128], index: 0, kind: input, shape index: {}, may-alias: {0,1}]
  %s1 = inlined_call_operand.vmem [shape: f32[8,128], index: 1, kind: output, shape index: {}, may-alias: {0,1}]
  %s2 = sld [smem:[#allocation0]]
  $region14: #{base_actor_forward.1} parent=0
    _
  %s4 = ssub.s32 1, %s2
  %s5 = scalar_select 0, %s4, %s2
  // Predicated region
  $region2: #{base_actor_forward.1} parent=0 // pred_check
    _
  $region3: #{base_actor_forward.1} parent=0 // pred_check_branch
    %7 = sbr.rel (0) target = $region5
  $region4: #{base_actor_forward.1} parent=0 // pred_region
    _
  $region5: #{base_actor_forward.1} parent=0 // pred_fallthru
    _
  %v8 = vld [vmem:[%s0] sm:$0xff]
  %9 = vst [vmem:[%s1] sm:$0xff] %v8
  // Predicated region
  $region6: #{base_actor_forward.1} parent=0 // pred_check
    _
  $region7: #{base_actor_forward.1} parent=0 // pred_check_branch
    %11 = sbr.rel (0) target = $region9
  $region8: #{base_actor_forward.1} parent=0 // pred_region
    _
  $region9: #{base_actor_forward.1} parent=0 // pred_fallthru
    _
  // Predicated region
  $region10: #{base_actor_forward.1} parent=0 // pred_check
    _
  $region11: #{base_actor_forward.1} parent=0 // pred_check_branch
    %13 = sbr.rel (0) target = $region13
  $region12: #{base_actor_forward.1} parent=0 // pred_region
    _
  $region13: #{base_actor_forward.1} parent=0 // pred_fallthru
    _

</llo_original>
